<compile_context>
chip_gen: v5e
topology: v5e:2x2
jax: 0.10.0
libtpu: 0.0.40
codegen_flags: <defaults>
</compile_context>

<pallas_src>
import numpy as np
import jax
import jax.numpy as jnp
from jax.experimental import pallas as pl
from jax.experimental.pallas import tpu as pltpu

BATCH = 2
MAX_LEN_TABLE = 16    # size of the precomputed table (module __init__ max_len)
SEQ = 8               # max_len passed to forward()
EMBED = 32            # embed_dim
LANES = 128


def build_positional_encoding(position, d_model):
    """Host-side, one-time sinusoidal table — identical math to the PyTorch module."""
    pos = np.arange(position)[:, np.newaxis]
    i = np.arange(d_model)[np.newaxis, :]
    angle_rates = 1.0 / np.power(10000, (2 * (i // 2)) / np.float32(d_model))
    angle_rads = pos * angle_rates                        # (P, E), float64
    angle_rads[:, 0::2] = np.sin(angle_rads[:, 0::2])
    angle_rads[:, 1::2] = np.cos(angle_rads[:, 1::2])
    return angle_rads[np.newaxis, ...].astype(np.float32)  # (1, P, E) numpy


def flat_shape(batch, seq, embed):
    """Lane-dense 2-D view of a (B, S, E) tensor: (total/128, 128) if possible."""
    total = batch * seq * embed
    if total % LANES == 0:
        return (total // LANES, LANES)
    return (batch, seq * embed)


def prepare_pos_encoding(pos_table_np, batch, max_len, embed):
    """Static, host-side: slice to max_len, broadcast over batch, flatten lane-dense."""
    assert pos_table_np.shape[1] >= max_len, "table shorter than requested max_len"
    pe = np.broadcast_to(pos_table_np[:, :max_len, :], (batch, max_len, embed))
    return jnp.asarray(np.ascontiguousarray(pe).reshape(flat_shape(batch, max_len, embed)),
                       dtype=jnp.float32)


def pos_embed_kernel(x_ref, pe_ref, o_ref):
    # Both operands are a single lane-dense (4, 128) tile resident in VMEM.
    o_ref[...] = x_ref[...] + pe_ref[...]


def position_embedding(x, pe_flat, max_len):
    """x: (B, S, E) activations; pe_flat: pre-broadcast, pre-flattened PE table."""
    B, S, E = x.shape
    assert S == max_len, "x sequence length must equal max_len (as in the reference)"

    x2 = x.reshape(pe_flat.shape)                 # contiguous minor-dim merge (bitcast)

    vmem_spec = pl.BlockSpec(memory_space=pltpu.MemorySpace.VMEM)
    out = pl.pallas_call(
        pos_embed_kernel,
        out_shape=jax.ShapeDtypeStruct(x2.shape, x.dtype),
        in_specs=[vmem_spec, vmem_spec],          # full arrays in VMEM, no grid,
        out_specs=vmem_spec,                      # no pipelining machinery
        input_output_aliases={0: 0},              # write result back into x's buffer
    )(x2, pe_flat)
    return out.reshape(B, S, E)


if __name__ == "__main__":
    key = jax.random.PRNGKey(0)
    x = jax.random.normal(key, (BATCH, SEQ, EMBED), jnp.float32)

    pos_table = build_positional_encoding(MAX_LEN_TABLE, EMBED)       # numpy (1,16,32)
    pe_flat = prepare_pos_encoding(pos_table, BATCH, SEQ, EMBED)      # jnp (4,128)

    # Reference of the PyTorch forward, computed BEFORE the kernel (kernel output
    # aliases x's flattened buffer).
    ref = x + jnp.asarray(pos_table[:, :SEQ, :])
    ref = jax.block_until_ready(ref)

    out = position_embedding(x, pe_flat, SEQ)
    out = jax.block_until_ready(out)

    assert out.shape == (BATCH, SEQ, EMBED) and out.dtype == jnp.float32
    assert jnp.allclose(out, ref, atol=1e-6, rtol=1e-6)
    print("KERNEL_OK")
</pallas_src>

<mosaic_0001>
module attributes {stable_mosaic.version = 11 : i64} {
  func.func @pos_embed_kernel(%arg0: memref<4x128xf32, #tpu.memory_space<vmem>>, %arg1: memref<4x128xf32, #tpu.memory_space<vmem>>, %arg2: memref<4x128xf32, #tpu.memory_space<vmem>>) attributes {dimension_semantics = [], scalar_prefetch = 0 : i64, scratch_operands = 0 : i64, tpu.core_type = #tpu.core_type<tc>} {
    %c0 = arith.constant 0 : index
    %c0_0 = arith.constant 0 : index
    %0 = vector.load %arg0[%c0, %c0_0] : memref<4x128xf32, #tpu.memory_space<vmem>>, vector<4x128xf32>
    %c0_1 = arith.constant 0 : index
    %c0_2 = arith.constant 0 : index
    %1 = vector.load %arg1[%c0_1, %c0_2] : memref<4x128xf32, #tpu.memory_space<vmem>>, vector<4x128xf32>
    %2 = arith.addf %0, %1 : vector<4x128xf32>
    %c0_3 = arith.constant 0 : index
    %c0_4 = arith.constant 0 : index
    %3 = vector.load %arg2[%c0_3, %c0_4] : memref<4x128xf32, #tpu.memory_space<vmem>>, vector<4x128xf32>
    tpu.vector_store %arg2[%c0_3, %c0_4], %2 {strides = array<i32>} : memref<4x128xf32, #tpu.memory_space<vmem>>, vector<4x128xf32>,
    return
  }
}

</mosaic_0001>

<llo_original>
// kernel: tpu_custom_call.1
$region0: #{tpu_custom_call.1}
  #allocation0 [shape = 'u32[]', space=smem, size = 0x4, offset = 0x4, fixed_abs, tag = 'smem constant byte address 0x4 - core index']
  #allocation1 [shape = 'u32[72,128]{1,0:T(1,128)}', space=vmem, size = 0x9000, scoped, tag = 'internal scratch']
  %s0 = inlined_call_operand.hbm [shape: f32[4,128], index: 0, kind: input, shape index: {}, may-alias: {0,2}]
  %s1 = inlined_call_operand.vmem [shape: f32[4,128], index: 1, kind: input, shape index: {}]
  %s2 = inlined_call_operand.hbm [shape: f32[4,128], index: 2, kind: output, shape index: {}, may-alias: {0,2}]
  %s3 = sld [smem:[#allocation0]]
  $region22: #{tpu_custom_call.1} parent=0
    _
  %s5 = ssub.s32 1, %s3
  %s6 = scalar_select 0, %s5, %s3
  $region1: #{tpu_custom_call.1} parent=0
    #allocation2 [shape = 'u8[2048]{0}', space=vmem, size = 0x800, scoped, tag = 'input window, operand 0, single buffered']
    #allocation3 [shape = 's32[1]{0}', space=sflag, size = 0x4, scoped, tag = 'scoped memory for tpu_custom_call.1']
    #allocation4 [shape = 's32[1]{0}', space=sflag, size = 0x4, scoped, tag = 'scoped memory for tpu_custom_call.1']
    #allocation5 [shape = 'u8[2048]{0}', space=vmem, size = 0x800, scoped, tag = 'output window, operand 0, single buffered']
    %7 = vsyncpa [#allocation3], 0
    %8 = vsyncpa [#allocation4], 0
    // Predicated region
    $region2: #{tpu_custom_call.1} parent=1 // pred_check
      _
    $region3: #{tpu_custom_call.1} parent=1 // pred_check_branch
      %10 = sbr.rel (0) target = $region5
    $region4: #{tpu_custom_call.1} parent=1 // pred_region
      %12 = vsyncadd [#allocation3], 0
      %s14 = sshll.u32 %s0, 4
      %s15 = int_to_ptr.hbm [resolvable:$true] %s14
      %s16 = sshll.u32 [#allocation2], 4
      %s17 = int_to_ptr.vmem [resolvable:$true] %s16
      %19 = dma.hbm_to_vmem [thread:$0]  %s15, 64, %s17, [#allocation3]
    $region5: #{tpu_custom_call.1} parent=1 // pred_fallthru
      _
    // Predicated region
    $region6: #{tpu_custom_call.1} parent=1 // pred_check
      _
    $region7: #{tpu_custom_call.1} parent=1 // pred_check_branch
      %21 = sbr.rel (0) target = $region9
    $region8: #{tpu_custom_call.1} parent=1 // pred_region
      _
    $region9: #{tpu_custom_call.1} parent=1 // pred_fallthru
      _
    // Predicated region
    $region10: #{tpu_custom_call.1} parent=1 // pred_check
      _
    $region11: #{tpu_custom_call.1} parent=1 // pred_check_branch
      %23 = sbr.rel (0) target = $region13
    $region12: #{tpu_custom_call.1} parent=1 // pred_region
      %25 = dma.done [#allocation3], 64
    $region13: #{tpu_custom_call.1} parent=1 // pred_fallthru
      _
    %v26 = vld [vmem:[#allocation2] sm:$0xf]
    %v27 = vld [vmem:[%s1] sm:$0xf]
    %v28 = vadd.f32 %v26, %v27
    %29 = vst [vmem:[#allocation5] sm:$0xf] %v28
    // Predicated region
    $region14: #{tpu_custom_call.1} parent=1 // pred_check
      _
    $region15: #{tpu_custom_call.1} parent=1 // pred_check_branch
      %31 = sbr.rel (0) target = $region17
    $region16: #{tpu_custom_call.1} parent=1 // pred_region
      %33 = vsyncadd [#allocation4], 0
      %s35 = sshll.u32 [#allocation5], 4
      %s36 = int_to_ptr.vmem [resolvable:$true] %s35
      %s37 = sshll.u32 %s2, 4
      %s38 = int_to_ptr.hbm [resolvable:$true] %s37
      %40 = dma.vmem_to_hbm [thread:$0]  %s36, 64, %s38, [#allocation4]
    $region17: #{tpu_custom_call.1} parent=1 // pred_fallthru
      _
    // Predicated region
    $region18: #{tpu_custom_call.1} parent=1 // pred_check
      _
    $region19: #{tpu_custom_call.1} parent=1 // pred_check_branch
      %42 = sbr.rel (0) target = $region21
    $region20: #{tpu_custom_call.1} parent=1 // pred_region
      %44 = dma.done [#allocation4], 64
    $region21: #{tpu_custom_call.1} parent=1 // pred_fallthru
      _
    %45 = vsyncpa [#allocation3], 1
    %46 = vsyncpa [#allocation4], 1

</llo_original>
